<compile_context>
chip_gen: v7x
topology: tpu7x:2x2x1
jax: 0.10.0
libtpu: 0.0.40
codegen_flags: <defaults>
</compile_context>

<pallas_src>
import jax
import jax.numpy as jnp
from jax.experimental import pallas as pl
from jax.experimental.pallas import tpu as pltpu


NCLS_PAD = 128  # lane-dense logits slab width


# ----------------------------- Pallas kernels ------------------------------ #

def _fused_fwd_kernel(p_ref, pool_ref, wconv_ref, wproj_ref, bproj_ref,
                      whead_ref, bhead_ref, o_ref):
    """Fused: conv-stem (im2col matmul) -> ReLU -> GAP (pool-matrix matmul) -> proj -> fused head."""
    # 3x3 conv as one batched matmul over all samples' patch rows: M = B*HW.
    # bf16 operands, f32 accumulation (MXU); elementwise math stays f32.
    h = jnp.dot(p_ref[...].astype(jnp.bfloat16),
                wconv_ref[...].astype(jnp.bfloat16),
                preferred_element_type=jnp.float32)                    # (B*HW, Cmid)
    h = jnp.maximum(h, 0.0)                                            # ReLU (f32, VPU)

    # Per-sample global average pool as a matmul with the (B, B*HW) pooling matrix (1/HW entries).
    pooled = jnp.dot(pool_ref[...], h,
                     preferred_element_type=jnp.float32)               # (B, Cmid)

    emb = jnp.dot(pooled.astype(jnp.bfloat16),
                  wproj_ref[...].astype(jnp.bfloat16),
                  preferred_element_type=jnp.float32) + bproj_ref[...]  # (B, D), ".float()" -> f32

    # Algebraically fused PCBM-hybrid head: emb @ (wcpt@wcls + wres) + (bcpt@wcls + bcls + bres),
    # produced lane-dense as (B, 128) and sliced to Ncls in the wrapper.
    logits = jnp.dot(emb.astype(jnp.bfloat16),
                     whead_ref[...].astype(jnp.bfloat16),
                     preferred_element_type=jnp.float32) + bhead_ref[...]
    o_ref[...] = logits.astype(o_ref.dtype)                             # (B, 128)


def _head_kernel(e_ref, whead_ref, bhead_ref, o_ref):
    """Head-only path for pre-embedded 2-D inputs (x.dim() != 4): single fused matmul."""
    logits = jnp.dot(e_ref[...].astype(jnp.bfloat16),
                     whead_ref[...].astype(jnp.bfloat16),
                     preferred_element_type=jnp.float32) + bhead_ref[...]
    o_ref[...] = logits.astype(o_ref.dtype)


# ------------------------------ pallas_call wrappers ------------------------ #

def fused_forward_4d(patches_flat, pool_mat, wconv, wproj, bproj, w_head, b_head):
    BHW, K9 = patches_flat.shape
    B = pool_mat.shape[0]
    Cmid = wconv.shape[1]
    D = wproj.shape[1]
    Npad = w_head.shape[1]
    return pl.pallas_call(
        _fused_fwd_kernel,
        out_shape=jax.ShapeDtypeStruct((B, Npad), jnp.float32),
        grid_spec=pltpu.PrefetchScalarGridSpec(
            num_scalar_prefetch=0,
            grid=(1,),                                   # whole batch in one step
            in_specs=[
                pl.BlockSpec((BHW, K9), lambda i: (0, 0)),
                pl.BlockSpec((B, BHW), lambda i: (0, 0)),
                pl.BlockSpec((K9, Cmid), lambda i: (0, 0)),
                pl.BlockSpec((Cmid, D), lambda i: (0, 0)),
                pl.BlockSpec((1, D), lambda i: (0, 0)),
                pl.BlockSpec((D, Npad), lambda i: (0, 0)),
                pl.BlockSpec((1, Npad), lambda i: (0, 0)),
            ],
            out_specs=pl.BlockSpec((B, Npad), lambda i: (0, 0)),
        ),
        compiler_params=pltpu.CompilerParams(dimension_semantics=("arbitrary",)),
    )(patches_flat, pool_mat, wconv, wproj, bproj, w_head, b_head)


def head_forward(emb, w_head, b_head):
    B, D = emb.shape
    Npad = w_head.shape[1]
    return pl.pallas_call(
        _head_kernel,
        out_shape=jax.ShapeDtypeStruct((B, Npad), jnp.float32),
        grid_spec=pltpu.PrefetchScalarGridSpec(
            num_scalar_prefetch=0,
            grid=(1,),
            in_specs=[
                pl.BlockSpec((B, D), lambda i: (0, 0)),
                pl.BlockSpec((D, Npad), lambda i: (0, 0)),
                pl.BlockSpec((1, Npad), lambda i: (0, 0)),
            ],
            out_specs=pl.BlockSpec((B, Npad), lambda i: (0, 0)),
        ),
        compiler_params=pltpu.CompilerParams(dimension_semantics=("arbitrary",)),
    )(emb, w_head, b_head)


# ------------------------------ JAX glue ------------------------------------ #

def im2col_3x3(x_nchw):
    """NCHW -> (B, H*W, 9*C) zero-padded 3x3 patches (stride 1, pad 1)."""
    B, C, H, W = x_nchw.shape
    x = jnp.transpose(x_nchw, (0, 2, 3, 1))                       # NHWC
    xp = jnp.pad(x, ((0, 0), (1, 1), (1, 1), (0, 0)))
    taps = [xp[:, di:di + H, dj:dj + W, :] for di in range(3) for dj in range(3)]
    patches = jnp.concatenate(taps, axis=-1)                      # (B, H, W, 9C)
    return patches.reshape(B, H * W, 9 * C)


def _pool_matrix(B, HW):
    """(B, B*HW) block matrix with 1/HW entries: pooled = P @ h gives per-sample mean."""
    rows = jnp.repeat(jnp.arange(B), HW)                          # sample id of each row
    return (jnp.arange(B)[:, None] == rows[None, :]).astype(jnp.float32) / float(HW)


def _fused_head_params(params, ncls_pad=NCLS_PAD):
    """Exact algebraic fusion of the PCBM-hybrid head, padded lane-dense to 128."""
    w_head = params["wcpt"] @ params["wcls"] + params["wres"]                       # (D, Ncls)
    b_head = params["bcpt"] @ params["wcls"] + params["bcls"] + params["bres"]      # (1, Ncls)
    D, ncls = w_head.shape
    w_pad = jnp.zeros((D, ncls_pad), jnp.float32).at[:, :ncls].set(w_head)
    b_pad = jnp.zeros((1, ncls_pad), jnp.float32).at[:, :ncls].set(b_head)
    return w_pad, b_pad, ncls


def adversarial_model_forward(params, x):
    """Equivalent of AdversarialModel.forward."""
    w_head, b_head, ncls = _fused_head_params(params)
    if x.ndim == 4:
        B, _, H, W = x.shape
        HW = H * W
        patches = im2col_3x3(x.astype(jnp.float32)).reshape(B * HW, -1)   # (B*HW, 9C)
        pool = _pool_matrix(B, HW)                                        # (B, B*HW)
        logits_pad = fused_forward_4d(patches, pool,
                                      params["wconv"], params["wproj"], params["bproj"],
                                      w_head, b_head)
    else:
        logits_pad = head_forward(x.astype(jnp.float32), w_head, b_head)
    return logits_pad[:, :ncls]                                           # drop lane padding


def init_params(key, C=4, Cmid=8, D=64, Ncpt=32, Ncls=10):
    ks = jax.random.split(key, 8)
    g = lambda k, shp, s: s * jax.random.normal(k, shp, jnp.float32)
    return dict(
        wconv=g(ks[0], (9 * C, Cmid), 0.1),    # conv 3x3, C -> Cmid (im2col matmul form)
        wproj=g(ks[1], (Cmid, D), 0.1),        # projection to embedding dim
        bproj=g(ks[2], (1, D), 0.01),
        wcpt=g(ks[3], (D, Ncpt), 0.1),         # concept bank projection
        bcpt=g(ks[4], (1, Ncpt), 0.01),
        wcls=g(ks[5], (Ncpt, Ncls), 0.1),      # concept -> class classifier
        bcls=g(ks[6], (1, Ncls), 0.01),
        wres=g(ks[7], (D, Ncls), 0.1),         # hybrid residual head on raw embedding
        bres=jnp.zeros((1, Ncls), jnp.float32),
    )


if __name__ == "__main__":
    key = jax.random.PRNGKey(0)
    k_x, k_emb, k_params = jax.random.split(key, 3)

    B, C, H, W = 2, 4, 16, 16
    D, Ncls = 64, 10

    params = init_params(k_params, C=C, Cmid=8, D=D, Ncpt=32, Ncls=Ncls)

    fwd = jax.jit(adversarial_model_forward)

    # 4-D image path (x.dim() == 4 -> backbone + head, fully fused in one pallas_call)
    x_img = jax.random.normal(k_x, (B, C, H, W), jnp.float32)
    logits = jax.block_until_ready(fwd(params, x_img))
    assert logits.shape == (B, Ncls) and logits.dtype == jnp.float32

    # 2-D pre-embedded path (x.dim() != 4 -> fused head only)
    x_emb = jax.random.normal(k_emb, (B, D), jnp.float32)
    logits2 = jax.block_until_ready(fwd(params, x_emb))
    assert logits2.shape == (B, Ncls) and logits2.dtype == jnp.float32

    print("KERNEL_OK")
</pallas_src>

<mosaic_0001>
module attributes {stable_mosaic.version = 11 : i64} {
  func.func @_fused_fwd_kernel(%arg0: i32, %arg1: memref<512x36xf32, #tpu.memory_space<vmem>>, %arg2: memref<2x512xf32, #tpu.memory_space<vmem>>, %arg3: memref<36x8xf32, #tpu.memory_space<vmem>>, %arg4: memref<8x64xf32, #tpu.memory_space<vmem>>, %arg5: memref<1x64xf32, #tpu.memory_space<vmem>>, %arg6: memref<64x128xf32, #tpu.memory_space<vmem>>, %arg7: memref<1x128xf32, #tpu.memory_space<vmem>>, %arg8: memref<2x128xf32, #tpu.memory_space<vmem>>) attributes {dimension_semantics = [#tpu.dimension_semantics<arbitrary>], iteration_bounds = array<i64: 1>, scalar_prefetch = 0 : i64, scratch_operands = 0 : i64, tpu.core_type = #tpu.core_type<tc>, window_params = [{pipeline_mode = #tpu.pipeline_mode<synchronous>, transform_indices = @transform_0, window_bounds = array<i64: 512, 36>}, {pipeline_mode = #tpu.pipeline_mode<synchronous>, transform_indices = @transform_1, window_bounds = array<i64: 2, 512>}, {pipeline_mode = #tpu.pipeline_mode<synchronous>, transform_indices = @transform_2, window_bounds = array<i64: 36, 8>}, {pipeline_mode = #tpu.pipeline_mode<synchronous>, transform_indices = @transform_3, window_bounds = array<i64: 8, 64>}, {pipeline_mode = #tpu.pipeline_mode<synchronous>, transform_indices = @transform_4, window_bounds = array<i64: 1, 64>}, {pipeline_mode = #tpu.pipeline_mode<synchronous>, transform_indices = @transform_5, window_bounds = array<i64: 64, 128>}, {pipeline_mode = #tpu.pipeline_mode<synchronous>, transform_indices = @transform_6, window_bounds = array<i64: 1, 128>}, {pipeline_mode = #tpu.pipeline_mode<synchronous>, transform_indices = @transform_7, window_bounds = array<i64: 2, 128>}]} {
    %c0 = arith.constant 0 : index
    %c0_0 = arith.constant 0 : index
    %0 = vector.load %arg1[%c0, %c0_0] : memref<512x36xf32, #tpu.memory_space<vmem>>, vector<512x36xf32>
    %1 = arith.truncf %0 : vector<512x36xf32> to vector<512x36xbf16>
    %c0_1 = arith.constant 0 : index
    %c0_2 = arith.constant 0 : index
    %2 = vector.load %arg3[%c0_1, %c0_2] : memref<36x8xf32, #tpu.memory_space<vmem>>, vector<36x8xf32>
    %3 = arith.truncf %2 : vector<36x8xf32> to vector<36x8xbf16>
    %cst = arith.constant dense<0.000000e+00> : vector<512x8xf32>
    %4 = tpu.matmul %1, %3, %cst {dimension_numbers = #tpu.dot_dimension_numbers<[1], [0], [0], [1], [0, 0, 1, 1], [], []>} : vector<512x36xbf16>, vector<36x8xbf16>, vector<512x8xf32> -> vector<512x8xf32>
    %cst_3 = arith.constant 0.000000e+00 : f32
    %5 = vector.broadcast %cst_3 : f32 to vector<512x8xf32>
    %6 = arith.maximumf %4, %5 : vector<512x8xf32>
    %c0_4 = arith.constant 0 : index
    %c0_5 = arith.constant 0 : index
    %7 = vector.load %arg2[%c0_4, %c0_5] : memref<2x512xf32, #tpu.memory_space<vmem>>, vector<2x512xf32>
    %cst_6 = arith.constant dense<0.000000e+00> : vector<2x8xf32>
    %8 = tpu.matmul %7, %6, %cst_6 {dimension_numbers = #tpu.dot_dimension_numbers<[1], [0], [0], [1], [0, 0, 1, 1], [], []>} : vector<2x512xf32>, vector<512x8xf32>, vector<2x8xf32> -> vector<2x8xf32>
    %9 = arith.truncf %8 : vector<2x8xf32> to vector<2x8xbf16>
    %c0_7 = arith.constant 0 : index
    %c0_8 = arith.constant 0 : index
    %10 = vector.load %arg4[%c0_7, %c0_8] : memref<8x64xf32, #tpu.memory_space<vmem>>, vector<8x64xf32>
    %11 = arith.truncf %10 : vector<8x64xf32> to vector<8x64xbf16>
    %cst_9 = arith.constant dense<0.000000e+00> : vector<2x64xf32>
    %12 = tpu.matmul %9, %11, %cst_9 {dimension_numbers = #tpu.dot_dimension_numbers<[1], [0], [0], [1], [0, 0, 1, 1], [], []>} : vector<2x8xbf16>, vector<8x64xbf16>, vector<2x64xf32> -> vector<2x64xf32>
    %c0_10 = arith.constant 0 : index
    %c0_11 = arith.constant 0 : index
    %13 = vector.load %arg5[%c0_10, %c0_11] : memref<1x64xf32, #tpu.memory_space<vmem>>, vector<1x64xf32>
    %14 = vector.broadcast %13 : vector<1x64xf32> to vector<2x64xf32>
    %15 = arith.addf %12, %14 : vector<2x64xf32>
    %16 = arith.truncf %15 : vector<2x64xf32> to vector<2x64xbf16>
    %c0_12 = arith.constant 0 : index
    %c0_13 = arith.constant 0 : index
    %17 = vector.load %arg6[%c0_12, %c0_13] : memref<64x128xf32, #tpu.memory_space<vmem>>, vector<64x128xf32>
    %18 = arith.truncf %17 : vector<64x128xf32> to vector<64x128xbf16>
    %cst_14 = arith.constant dense<0.000000e+00> : vector<2x128xf32>
    %19 = tpu.matmul %16, %18, %cst_14 {dimension_numbers = #tpu.dot_dimension_numbers<[1], [0], [0], [1], [0, 0, 1, 1], [], []>} : vector<2x64xbf16>, vector<64x128xbf16>, vector<2x128xf32> -> vector<2x128xf32>
    %c0_15 = arith.constant 0 : index
    %c0_16 = arith.constant 0 : index
    %20 = vector.load %arg7[%c0_15, %c0_16] : memref<1x128xf32, #tpu.memory_space<vmem>>, vector<1x128xf32>
    %21 = vector.broadcast %20 : vector<1x128xf32> to vector<2x128xf32>
    %22 = arith.addf %19, %21 : vector<2x128xf32>
    %c0_17 = arith.constant 0 : index
    %c0_18 = arith.constant 0 : index
    %23 = vector.load %arg8[%c0_17, %c0_18] : memref<2x128xf32, #tpu.memory_space<vmem>>, vector<2x128xf32>
    tpu.vector_store %arg8[%c0_17, %c0_18], %22 {strides = array<i32>} : memref<2x128xf32, #tpu.memory_space<vmem>>, vector<2x128xf32>,
    return
  }
  func.func @transform_0(%arg0: i32) -> (i32, i32) {
    %c0_i32 = arith.constant 0 : i32
    %c0_i32_0 = arith.constant 0 : i32
    %c0_i32_1 = arith.constant 0 : i32
    return %c0_i32, %c0_i32_0 : i32, i32
  }
  func.func @transform_1(%arg0: i32) -> (i32, i32) {
    %c0_i32 = arith.constant 0 : i32
    %c0_i32_0 = arith.constant 0 : i32
    %c0_i32_1 = arith.constant 0 : i32
    return %c0_i32, %c0_i32_0 : i32, i32
  }
  func.func @transform_2(%arg0: i32) -> (i32, i32) {
    %c0_i32 = arith.constant 0 : i32
    %c0_i32_0 = arith.constant 0 : i32
    %c0_i32_1 = arith.constant 0 : i32
    return %c0_i32, %c0_i32_0 : i32, i32
  }
  func.func @transform_3(%arg0: i32) -> (i32, i32) {
    %c0_i32 = arith.constant 0 : i32
    %c0_i32_0 = arith.constant 0 : i32
    %c0_i32_1 = arith.constant 0 : i32
    return %c0_i32, %c0_i32_0 : i32, i32
  }
  func.func @transform_4(%arg0: i32) -> (i32, i32) {
    %c0_i32 = arith.constant 0 : i32
    %c0_i32_0 = arith.constant 0 : i32
    %c0_i32_1 = arith.constant 0 : i32
    return %c0_i32, %c0_i32_0 : i32, i32
  }
  func.func @transform_5(%arg0: i32) -> (i32, i32) {
    %c0_i32 = arith.constant 0 : i32
    %c0_i32_0 = arith.constant 0 : i32
    %c0_i32_1 = arith.constant 0 : i32
    return %c0_i32, %c0_i32_0 : i32, i32
  }
  func.func @transform_6(%arg0: i32) -> (i32, i32) {
    %c0_i32 = arith.constant 0 : i32
    %c0_i32_0 = arith.constant 0 : i32
    %c0_i32_1 = arith.constant 0 : i32
    return %c0_i32, %c0_i32_0 : i32, i32
  }
  func.func @transform_7(%arg0: i32) -> (i32, i32) {
    %c0_i32 = arith.constant 0 : i32
    %c0_i32_0 = arith.constant 0 : i32
    %c0_i32_1 = arith.constant 0 : i32
    return %c0_i32, %c0_i32_0 : i32, i32
  }
}

</mosaic_0001>

<llo_original>
// kernel: adversarial_model_forward.1
$region0: #{adversarial_model_forward.1}
  #allocation0 [shape = 'u32[]', space=smem, size = 0x4, offset = 0x4, fixed_abs, tag = 'smem constant byte address 0x4 - core index']
  #allocation1 [shape = 'u32[144,128]{1,0:T(1,128)}', space=vmem, size = 0x12000, scoped, tag = 'internal scratch']
  %s0 = inlined_call_operand.vmem [shape: f32[512,36], index: 0, kind: input, shape index: {}]
  %s1 = inlined_call_operand.vmem [shape: f32[2,512], index: 1, kind: input, shape index: {}]
  %s2 = inlined_call_operand.vmem [shape: f32[36,8], index: 2, kind: input, shape index: {}]
  %s3 = inlined_call_operand.vmem [shape: f32[8,64], index: 3, kind: input, shape index: {}]
  %s4 = inlined_call_operand.vmem [shape: f32[1,64], index: 4, kind: input, shape index: {}]
  %s5 = inlined_call_operand.vmem [shape: f32[64,128], index: 5, kind: input, shape index: {}]
  %s6 = inlined_call_operand.vmem [shape: f32[1,128], index: 6, kind: input, shape index: {}]
  %s7 = inlined_call_operand.hbm [shape: f32[2,128], index: 7, kind: output, shape index: {}]
  %s8 = sld [smem:[#allocation0]]
  $region38: #{adversarial_model_forward.1} parent=0
    _
  %s10 = ssub.s32 1, %s8
  %s11 = scalar_select 0, %s10, %s8
  $region1: #{adversarial_model_forward.1} parent=0
    #allocation2 [shape = 'u8[1024]{0}', space=vmem, size = 0x400, scoped, tag = 'output window, operand 0, single buffered']
    #allocation3 [shape = 's32[1]{0}', space=sflag, size = 0x4, scoped, tag = 'scoped memory for adversarial_model_forward.1']
    %12 = vsyncpa [#allocation3], 0
    // Predicated region
    $region2: #{adversarial_model_forward.1} parent=1 // pred_check
      _
    $region3: #{adversarial_model_forward.1} parent=1 // pred_check_branch
      %14 = sbr.rel (0) target = $region5
    $region4: #{adversarial_model_forward.1} parent=1 // pred_region
      _
    $region5: #{adversarial_model_forward.1} parent=1 // pred_fallthru
      _
    // Predicated region
    $region6: #{adversarial_model_forward.1} parent=1 // pred_check
      _
    $region7: #{adversarial_model_forward.1} parent=1 // pred_check_branch
      %16 = sbr.rel (0) target = $region9
    $region8: #{adversarial_model_forward.1} parent=1 // pred_region
      _
    $region9: #{adversarial_model_forward.1} parent=1 // pred_fallthru
      _
    // Predicated region
    $region10: #{adversarial_model_forward.1} parent=1 // pred_check
      _
    $region11: #{adversarial_model_forward.1} parent=1 // pred_check_branch
      %18 = sbr.rel (0) target = $region13
    $region12: #{adversarial_model_forward.1} parent=1 // pred_region
      _
    $region13: #{adversarial_model_forward.1} parent=1 // pred_fallthru
      _
    // Predicated region
    $region14: #{adversarial_model_forward.1} parent=1 // pred_check
      _
    $region15: #{adversarial_model_forward.1} parent=1 // pred_check_branch
      %20 = sbr.rel (0) target = $region17
    $region16: #{adversarial_model_forward.1} parent=1 // pred_region
      _
    $region17: #{adversarial_model_forward.1} parent=1 // pred_fallthru
      _
    // Predicated region
    $region18: #{adversarial_model_forward.1} parent=1 // pred_check
      _
    $region19: #{adversarial_model_forward.1} parent=1 // pred_check_branch
      %22 = sbr.rel (0) target = $region21
    $region20: #{adversarial_model_forward.1} parent=1 // pred_region
      _
    $region21: #{adversarial_model_forward.1} parent=1 // pred_fallthru
      _
    // Predicated region
    $region22: #{adversarial_model_forward.1} parent=1 // pred_check
      _
    $region23: #{adversarial_model_forward.1} parent=1 // pred_check_branch
      %24 = sbr.rel (0) target = $region25
    $region24: #{adversarial_model_forward.1} parent=1 // pred_region
      _
    $region25: #{adversarial_model_forward.1} parent=1 // pred_fallthru
      _
    // Predicated region
    $region26: #{adversarial_model_forward.1} parent=1 // pred_check
      _
    $region27: #{adversarial_model_forward.1} parent=1 // pred_check_branch
      %26 = sbr.rel (0) target = $region29
    $region28: #{adversarial_model_forward.1} parent=1 // pred_region
      _
    $region29: #{adversarial_model_forward.1} parent=1 // pred_fallthru
      _
    %v28 = vld [vmem:[%s0] sm:$0xff]
    %v29 = vld [vmem:[%s0 + $0x8] sm:$0xff]
    %v30 = vld [vmem:[%s0 + $0x10] sm:$0xff]
    %v31 = vld [vmem:[%s0 + $0x18] sm:$0xff]
    %v32 = vld [vmem:[%s0 + $0x20] sm:$0xff]
    %v33 = vld [vmem:[%s0 + $0x28] sm:$0xff]
    %v34 = vld [vmem:[%s0 + $0x30] sm:$0xff]
    %v35 = vld [vmem:[%s0 + $0x38] sm:$0xff]
    %v36 = vld [vmem:[%s0 + $0x40] sm:$0xff]
    %v37 = vld [vmem:[%s0 + $0x48] sm:$0xff]
    %v38 = vld [vmem:[%s0 + $0x50] sm:$0xff]
    %v39 = vld [vmem:[%s0 + $0x58] sm:$0xff]
    %v40 = vld [vmem:[%s0 + $0x60] sm:$0xff]
    %v41 = vld [vmem:[%s0 + $0x68] sm:$0xff]
    %v42 = vld [vmem:[%s0 + $0x70] sm:$0xff]
    %v43 = vld [vmem:[%s0 + $0x78] sm:$0xff]
    %v44 = vld [vmem:[%s0 + $0x80] sm:$0xff]
    %v45 = vld [vmem:[%s0 + $0x88] sm:$0xff]
    %v46 = vld [vmem:[%s0 + $0x90] sm:$0xff]
    %v47 = vld [vmem:[%s0 + $0x98] sm:$0xff]
    %v48 = vld [vmem:[%s0 + $0xa0] sm:$0xff]
    %v49 = vld [vmem:[%s0 + $0xa8] sm:$0xff]
    %v50 = vld [vmem:[%s0 + $0xb0] sm:$0xff]
    %v51 = vld [vmem:[%s0 + $0xb8] sm:$0xff]
    %v52 = vld [vmem:[%s0 + $0xc0] sm:$0xff]
    %v53 = vld [vmem:[%s0 + $0xc8] sm:$0xff]
    %v54 = vld [vmem:[%s0 + $0xd0] sm:$0xff]
    %v55 = vld [vmem:[%s0 + $0xd8] sm:$0xff]
    %v56 = vld [vmem:[%s0 + $0xe0] sm:$0xff]
    %v57 = vld [vmem:[%s0 + $0xe8] sm:$0xff]
    %v58 = vld [vmem:[%s0 + $0xf0] sm:$0xff]
    %v59 = vld [vmem:[%s0 + $0xf8] sm:$0xff]
    %v60 = vld [vmem:[%s0 + $0x100] sm:$0xff]
    %v61 = vld [vmem:[%s0 + $0x108] sm:$0xff]
    %v62 = vld [vmem:[%s0 + $0x110] sm:$0xff]
    %v63 = vld [vmem:[%s0 + $0x118] sm:$0xff]
    %v64 = vld [vmem:[%s0 + $0x120] sm:$0xff]
    %v65 = vld [vmem:[%s0 + $0x128] sm:$0xff]
    %v66 = vld [vmem:[%s0 + $0x130] sm:$0xff]
    %v67 = vld [vmem:[%s0 + $0x138] sm:$0xff]
    %v68 = vld [vmem:[%s0 + $0x140] sm:$0xff]
    %v69 = vld [vmem:[%s0 + $0x148] sm:$0xff]
    %v70 = vld [vmem:[%s0 + $0x150] sm:$0xff]
    %v71 = vld [vmem:[%s0 + $0x158] sm:$0xff]
    %v72 = vld [vmem:[%s0 + $0x160] sm:$0xff]
    %v73 = vld [vmem:[%s0 + $0x168] sm:$0xff]
    %v74 = vld [vmem:[%s0 + $0x170] sm:$0xff]
    %v75 = vld [vmem:[%s0 + $0x178] sm:$0xff]
    %v76 = vld [vmem:[%s0 + $0x180] sm:$0xff]
    %v77 = vld [vmem:[%s0 + $0x188] sm:$0xff]
    %v78 = vld [vmem:[%s0 + $0x190] sm:$0xff]
    %v79 = vld [vmem:[%s0 + $0x198] sm:$0xff]
    %v80 = vld [vmem:[%s0 + $0x1a0] sm:$0xff]
    %v81 = vld [vmem:[%s0 + $0x1a8] sm:$0xff]
    %v82 = vld [vmem:[%s0 + $0x1b0] sm:$0xff]
    %v83 = vld [vmem:[%s0 + $0x1b8] sm:$0xff]
    %v84 = vld [vmem:[%s0 + $0x1c0] sm:$0xff]
    %v85 = vld [vmem:[%s0 + $0x1c8] sm:$0xff]
    %v86 = vld [vmem:[%s0 + $0x1d0] sm:$0xff]
    %v87 = vld [vmem:[%s0 + $0x1d8] sm:$0xff]
    %v88 = vld [vmem:[%s0 + $0x1e0] sm:$0xff]
    %v89 = vld [vmem:[%s0 + $0x1e8] sm:$0xff]
    %v90 = vld [vmem:[%s0 + $0x1f0] sm:$0xff]
    %v91 = vld [vmem:[%s0 + $0x1f8] sm:$0xff]
    %v92 = vpack.c.bf16 %v29, %v28
    %v93 = vpack.c.bf16 %v31, %v30
    %v94 = vpack.c.bf16 %v33, %v32
    %v95 = vpack.c.bf16 %v35, %v34
    %v96 = vpack.c.bf16 %v37, %v36
    %v97 = vpack.c.bf16 %v39, %v38
    %v98 = vpack.c.bf16 %v41, %v40
    %v99 = vpack.c.bf16 %v43, %v42
    %v100 = vpack.c.bf16 %v45, %v44
    %v101 = vpack.c.bf16 %v47, %v46
    %v102 = vpack.c.bf16 %v49, %v48
    %v103 = vpack.c.bf16 %v51, %v50
    %v104 = vpack.c.bf16 %v53, %v52
    %v105 = vpack.c.bf16 %v55, %v54
    %v106 = vpack.c.bf16 %v57, %v56
    %v107 = vpack.c.bf16 %v59, %v58
    %v108 = vpack.c.bf16 %v61, %v60
    %v109 = vpack.c.bf16 %v63, %v62
    %v110 = vpack.c.bf16 %v65, %v64
    %v111 = vpack.c.bf16 %v67, %v66
    %v112 = vpack.c.bf16 %v69, %v68
    %v113 = vpack.c.bf16 %v71, %v70
    %v114 = vpack.c.bf16 %v73, %v72
    %v115 = vpack.c.bf16 %v75, %v74
    %v116 = vpack.c.bf16 %v77, %v76
    %v117 = vpack.c.bf16 %v79, %v78
    %v118 = vpack.c.bf16 %v81, %v80
    %v119 = vpack.c.bf16 %v83, %v82
    %v120 = vpack.c.bf16 %v85, %v84
    %v121 = vpack.c.bf16 %v87, %v86
    %v122 = vpack.c.bf16 %v89, %v88
    %v123 = vpack.c.bf16 %v91, %v90
    %v124 = vld [vmem:[%s2] sm:$0xff]
    %v125 = vld [vmem:[%s2 + $0x8] sm:$0xff]
    %v126 = vld [vmem:[%s2 + $0x10] sm:$0xff]
    %v127 = vld [vmem:[%s2 + $0x18] sm:$0xff]
    %v128 = vld [vmem:[%s2 + $0x20] sm:$0xf]
    %v129 = vpack.c.bf16 %v125, %v124
    %v130 = vpack.c.bf16 %v127, %v126
    %v131 = vpack.c.bf16 %v128, %v128
    %vm132 = vcmask 293888
    %v134 = vsel %vm132, %v92, 0
    %v137 = vsel %vm132, %v93, 0
    %v140 = vsel %vm132, %v94, 0
    %v143 = vsel %vm132, %v95, 0
    %v146 = vsel %vm132, %v96, 0
    %v149 = vsel %vm132, %v97, 0
    %v152 = vsel %vm132, %v98, 0
    %v155 = vsel %vm132, %v99, 0
    %v158 = vsel %vm132, %v100, 0
    %v161 = vsel %vm132, %v101, 0
    %v164 = vsel %vm132, %v102, 0
    %v167 = vsel %vm132, %v103, 0
    %v170 = vsel %vm132, %v104, 0
    %v173 = vsel %vm132, %v105, 0
    %v176 = vsel %vm132, %v106, 0
    %v179 = vsel %vm132, %v107, 0
    %v182 = vsel %vm132, %v108, 0
    %v185 = vsel %vm132, %v109, 0
    %v188 = vsel %vm132, %v110, 0
    %v191 = vsel %vm132, %v111, 0
    %v194 = vsel %vm132, %v112, 0
    %v197 = vsel %vm132, %v113, 0
    %v200 = vsel %vm132, %v114, 0
    %v203 = vsel %vm132, %v115, 0
    %v206 = vsel %vm132, %v116, 0
    %v209 = vsel %vm132, %v117, 0
    %v212 = vsel %vm132, %v118, 0
    %v215 = vsel %vm132, %v119, 0
    %v218 = vsel %vm132, %v120, 0
    %v221 = vsel %vm132, %v121, 0
    %v224 = vsel %vm132, %v122, 0
    %v227 = vsel %vm132, %v123, 0
    %vm229 = vcmask 1041408
    %v231 = vsel %vm229, %v131, 0
    %233 = vmatprep.subr.bf16.mxu0 0
    %234 = vmatpush1.bf16.msra.mxu0 %v129
    %235 = vmatprep.subr.bf16.mxu0 0
    %236 = vmatpush1.bf16.msra.mxu0 %v130
    %237 = vmatprep.subr.bf16.mxu0 0
    %238 = vmatpush1.bf16.msra.mxu0 %v231
    %239 = vmatprep.subr.bf16.mxu0 0
    %240 = vmatpush1.bf16.msra.mxu0 0
    %241 = vmatprep.subr.bf16.mxu0 0
    %242 = vmatpush1.bf16.msra.mxu0 0
    %243 = vmatprep.subr.bf16.mxu0 0
    %244 = vmatpush1.bf16.msra.mxu0 0
    %245 = vmatprep.subr.bf16.mxu0 0
    %246 = vmatpush1.bf16.msra.mxu0 0
    %247 = vmatprep.subr.bf16.mxu0 0
    %248 = vmatpush1.bf16.msra.mxu0 0
    %249 = vmatprep.subr.bf16.mxu0 0
    %250 = vmatpush1.bf16.msra.mxu0 0
    %251 = vmatprep.subr.bf16.mxu0 0
    %252 = vmatpush1.bf16.msra.mxu0 0
    %253 = vmatprep.subr.bf16.mxu0 0
    %254 = vmatpush1.bf16.msra.mxu0 0
    %255 = vmatprep.subr.bf16.mxu0 0
    %256 = vmatpush1.bf16.msra.mxu0 0
    %257 = vmatprep.subr.bf16.mxu0 0
    %258 = vmatpush1.bf16.msra.mxu0 0
    %259 = vmatprep.subr.bf16.mxu0 0
    %260 = vmatpush1.bf16.msra.mxu0 0
    %261 = vmatprep.subr.bf16.mxu0 0
    %262 = vmatpush1.bf16.msra.mxu0 0
    %263 = vmatprep.subr.bf16.mxu0 0
    %264 = vmatpush1.bf16.msra.mxu0 0
    %265 = vmatprep.mubr.bf16.mxu0 0
    %266 = vmatmul.mubr.bf16.gmra.mrb[0].mxu0 %v134
    %v267 = vpop.f32.mrb[0].mxu0
    %v268 = vadd.f32 0.0, %v267
    %v269 = vpop.f32.mrb[0].mxu0
    %v270 = vpop.f32.mrb[0].mxu0
    %v271 = vadd.f32 0.0, %v270
    %v272 = vpop.f32.mrb[0].mxu0
    %273 = vmatprep.mubr.bf16.mxu0 0
    %274 = vmatmul.mubr.bf16.gmra.mrb[0].mxu0 %v137
    %v275 = vpop.f32.mrb[0].mxu0
    %v276 = vadd.f32 0.0, %v275
    %v277 = vpop.f32.mrb[0].mxu0
    %v278 = vpop.f32.mrb[0].mxu0
    %v279 = vadd.f32 0.0, %v278
    %v280 = vpop.f32.mrb[0].mxu0
    %281 = vmatprep.mubr.bf16.mxu0 0
    %282 = vmatmul.mubr.bf16.gmra.mrb[0].mxu0 %v140
    %v283 = vpop.f32.mrb[0].mxu0
    %v284 = vadd.f32 0.0, %v283
    %v285 = vpop.f32.mrb[0].mxu0
    %v286 = vpop.f32.mrb[0].mxu0
    %v287 = vadd.f32 0.0, %v286
    %v288 = vpop.f32.mrb[0].mxu0
    %289 = vmatprep.mubr.bf16.mxu0 0
    %290 = vmatmul.mubr.bf16.gmra.mrb[0].mxu0 %v143
    %v291 = vpop.f32.mrb[0].mxu0
    %v292 = vadd.f32 0.0, %v291
    %v293 = vpop.f32.mrb[0].mxu0
    %v294 = vpop.f32.mrb[0].mxu0
    %v295 = vadd.f32 0.0, %v294
    %v296 = vpop.f32.mrb[0].mxu0
    %297 = vmatprep.mubr.bf16.mxu0 0
    %298 = vmatmul.mubr.bf16.gmra.mrb[0].mxu0 %v146
    %v299 = vpop.f32.mrb[0].mxu0
    %v300 = vadd.f32 0.0, %v299
    %v301 = vpop.f32.mrb[0].mxu0
    %v302 = vpop.f32.mrb[0].mxu0
    %v303 = vadd.f32 0.0, %v302
    %v304 = vpop.f32.mrb[0].mxu0
    %305 = vmatprep.mubr.bf16.mxu0 0
    %306 = vmatmul.mubr.bf16.gmra.mrb[0].mxu0 %v149
    %v307 = vpop.f32.mrb[0].mxu0
    %v308 = vadd.f32 0.0, %v307
    %v309 = vpop.f32.mrb[0].mxu0
    %v310 = vpop.f32.mrb[0].mxu0
    %v311 = vadd.f32 0.0, %v310
    %v312 = vpop.f32.mrb[0].mxu0
    %313 = vmatprep.mubr.bf16.mxu0 0
    %314 = vmatmul.mubr.bf16.gmra.mrb[0].mxu0 %v152
    %v315 = vpop.f32.mrb[0].mxu0
    %v316 = vadd.f32 0.0, %v315
    %v317 = vpop.f32.mrb[0].mxu0
    %v318 = vpop.f32.mrb[0].mxu0
    %v319 = vadd.f32 0.0, %v318
    %v320 = vpop.f32.mrb[0].mxu0
    %321 = vmatprep.mubr.bf16.mxu0 0
    %322 = vmatmul.mubr.bf16.gmra.mrb[0].mxu0 %v155
    %v323 = vpop.f32.mrb[0].mxu0
    %v324 = vadd.f32 0.0, %v323
    %v325 = vpop.f32.mrb[0].mxu0
    %v326 = vpop.f32.mrb[0].mxu0
    %v327 = vadd.f32 0.0, %v326
    %v328 = vpop.f32.mrb[0].mxu0
    %329 = vmatprep.mubr.bf16.mxu0 0
    %330 = vmatmul.mubr.bf16.gmra.mrb[0].mxu0 %v158
    %v331 = vpop.f32.mrb[0].mxu0
    %v332 = vadd.f32 0.0, %v331
    %v333 = vpop.f32.mrb[0].mxu0
    %v334 = vpop.f32.mrb[0].mxu0
    %v335 = vadd.f32 0.0, %v334
    %v336 = vpop.f32.mrb[0].mxu0
    %337 = vmatprep.mubr.bf16.mxu0 0
    %338 = vmatmul.mubr.bf16.gmra.mrb[0].mxu0 %v161
    %v339 = vpop.f32.mrb[0].mxu0
    %v340 = vadd.f32 0.0, %v339
    %v341 = vpop.f32.mrb[0].mxu0
    %v342 = vpop.f32.mrb[0].mxu0
    %v343 = vadd.f32 0.0, %v342
    %v344 = vpop.f32.mrb[0].mxu0
    %345 = vmatprep.mubr.bf16.mxu0 0
    %346 = vmatmul.mubr.bf16.gmra.mrb[0].mxu0 %v164
    %v347 = vpop.f32.mrb[0].mxu0
    %v348 = vadd.f32 0.0, %v347
    %v349 = vpop.f32.mrb[0].mxu0
    %v350 = vpop.f32.mrb[0].mxu0
    %v351 = vadd.f32 0.0, %v350
    %v352 = vpop.f32.mrb[0].mxu0
    %353 = vmatprep.mubr.bf16.mxu0 0
    %354 = vmatmul.mubr.bf16.gmra.mrb[0].mxu0 %v167
    %v355 = vpop.f32.mrb[0].mxu0
    %v356 = vadd.f32 0.0, %v355
    %v357 = vpop.f32.mrb[0].mxu0
    %v358 = vpop.f32.mrb[0].mxu0
    %v359 = vadd.f32 0.0, %v358
    %v360 = vpop.f32.mrb[0].mxu0
    %361 = vmatprep.mubr.bf16.mxu0 0
    %362 = vmatmul.mubr.bf16.gmra.mrb[0].mxu0 %v170
    %v363 = vpop.f32.mrb[0].mxu0
    %v364 = vadd.f32 0.0, %v363
    %v365 = vpop.f32.mrb[0].mxu0
    %v366 = vpop.f32.mrb[0].mxu0
    %v367 = vadd.f32 0.0, %v366
    %v368 = vpop.f32.mrb[0].mxu0
    %369 = vmatprep.mubr.bf16.mxu0 0
    %370 = vmatmul.mubr.bf16.gmra.mrb[0].mxu0 %v173
    %v371 = vpop.f32.mrb[0].mxu0
    %v372 = vadd.f32 0.0, %v371
    %v373 = vpop.f32.mrb[0].mxu0
    %v374 = vpop.f32.mrb[0].mxu0
    %v375 = vadd.f32 0.0, %v374
    %v376 = vpop.f32.mrb[0].mxu0
    %377 = vmatprep.mubr.bf16.mxu0 0
    %378 = vmatmul.mubr.bf16.gmra.mrb[0].mxu0 %v176
    %v379 = vpop.f32.mrb[0].mxu0
    %v380 = vadd.f32 0.0, %v379
    %v381 = vpop.f32.mrb[0].mxu0
    %v382 = vpop.f32.mrb[0].mxu0
    %v383 = vadd.f32 0.0, %v382
    %v384 = vpop.f32.mrb[0].mxu0
    %385 = vmatprep.mubr.bf16.mxu0 0
    %386 = vmatmul.mubr.bf16.gmra.mrb[0].mxu0 %v179
    %v387 = vpop.f32.mrb[0].mxu0
    %v388 = vadd.f32 0.0, %v387
    %v389 = vpop.f32.mrb[0].mxu0
    %v390 = vpop.f32.mrb[0].mxu0
    %v391 = vadd.f32 0.0, %v390
    %v392 = vpop.f32.mrb[0].mxu0
    %393 = vmatprep.mubr.bf16.mxu0 0
    %394 = vmatmul.mubr.bf16.gmra.mrb[0].mxu0 %v182
    %v395 = vpop.f32.mrb[0].mxu0
    %v396 = vadd.f32 0.0, %v395
    %v397 = vpop.f32.mrb[0].mxu0
    %v398 = vpop.f32.mrb[0].mxu0
    %v399 = vadd.f32 0.0, %v398
    %v400 = vpop.f32.mrb[0].mxu0
    %401 = vmatprep.mubr.bf16.mxu0 0
    %402 = vmatmul.mubr.bf16.gmra.mrb[0].mxu0 %v185
    %v403 = vpop.f32.mrb[0].mxu0
    %v404 = vadd.f32 0.0, %v403
    %v405 = vpop.f32.mrb[0].mxu0
    %v406 = vpop.f32.mrb[0].mxu0
    %v407 = vadd.f32 0.0, %v406
    %v408 = vpop.f32.mrb[0].mxu0
    %409 = vmatprep.mubr.bf16.mxu0 0
    %410 = vmatmul.mubr.bf16.gmra.mrb[0].mxu0 %v188
    %v411 = vpop.f32.mrb[0].mxu0
    %v412 = vadd.f32 0.0, %v411
    %v413 = vpop.f32.mrb[0].mxu0
    %v414 = vpop.f32.mrb[0].mxu0
    %v415 = vadd.f32 0.0, %v414
    %v416 = vpop.f32.mrb[0].mxu0
    %417 = vmatprep.mubr.bf16.mxu0 0
    %418 = vmatmul.mubr.bf16.gmra.mrb[0].mxu0 %v191
    %v419 = vpop.f32.mrb[0].mxu0
    %v420 = vadd.f32 0.0, %v419
    %v421 = vpop.f32.mrb[0].mxu0
    %v422 = vpop.f32.mrb[0].mxu0
    %v423 = vadd.f32 0.0, %v422
    %v424 = vpop.f32.mrb[0].mxu0
    %425 = vmatprep.mubr.bf16.mxu0 0
    %426 = vmatmul.mubr.bf16.gmra.mrb[0].mxu0 %v194
    %v427 = vpop.f32.mrb[0].mxu0
    %v428 = vadd.f32 0.0, %v427
    %v429 = vpop.f32.mrb[0].mxu0
    %v430 = vpop.f32.mrb[0].mxu0
    %v431 = vadd.f32 0.0, %v430
    %v432 = vpop.f32.mrb[0].mxu0
    %433 = vmatprep.mubr.bf16.mxu0 0
    %434 = vmatmul.mubr.bf16.gmra.mrb[0].mxu0 %v197
    %v435 = vpop.f32.mrb[0].mxu0
    %v436 = vadd.f32 0.0, %v435
    %v437 = vpop.f32.mrb[0].mxu0
    %v438 = vpop.f32.mrb[0].mxu0
    %v439 = vadd.f32 0.0, %v438
    %v440 = vpop.f32.mrb[0].mxu0
    %441 = vmatprep.mubr.bf16.mxu0 0
    %442 = vmatmul.mubr.bf16.gmra.mrb[0].mxu0 %v200
    %v443 = vpop.f32.mrb[0].mxu0
    %v444 = vadd.f32 0.0, %v443
    %v445 = vpop.f32.mrb[0].mxu0
    %v446 = vpop.f32.mrb[0].mxu0
    %v447 = vadd.f32 0.0, %v446
    %v448 = vpop.f32.mrb[0].mxu0
    %449 = vmatprep.mubr.bf16.mxu0 0
    %450 = vmatmul.mubr.bf16.gmra.mrb[0].mxu0 %v203
    %v451 = vpop.f32.mrb[0].mxu0
    %v452 = vadd.f32 0.0, %v451
    %v453 = vpop.f32.mrb[0].mxu0
    %v454 = vpop.f32.mrb[0].mxu0
    %v455 = vadd.f32 0.0, %v454
    %v456 = vpop.f32.mrb[0].mxu0
    %457 = vmatprep.mubr.bf16.mxu0 0
    %458 = vmatmul.mubr.bf16.gmra.mrb[0].mxu0 %v206
    %v459 = vpop.f32.mrb[0].mxu0
    %v460 = vadd.f32 0.0, %v459
    %v461 = vpop.f32.mrb[0].mxu0
    %v462 = vpop.f32.mrb[0].mxu0
    %v463 = vadd.f32 0.0, %v462
    %v464 = vpop.f32.mrb[0].mxu0
    %465 = vmatprep.mubr.bf16.mxu0 0
    %466 = vmatmul.mubr.bf16.gmra.mrb[0].mxu0 %v209
    %v467 = vpop.f32.mrb[0].mxu0
    %v468 = vadd.f32 0.0, %v467
    %v469 = vpop.f32.mrb[0].mxu0
    %v470 = vpop.f32.mrb[0].mxu0
    %v471 = vadd.f32 0.0, %v470
    %v472 = vpop.f32.mrb[0].mxu0
    %473 = vmatprep.mubr.bf16.mxu0 0
    %474 = vmatmul.mubr.bf16.gmra.mrb[0].mxu0 %v212
    %v475 = vpop.f32.mrb[0].mxu0
    %v476 = vadd.f32 0.0, %v475
    %v477 = vpop.f32.mrb[0].mxu0
    %v478 = vpop.f32.mrb[0].mxu0
    %v479 = vadd.f32 0.0, %v478
    %v480 = vpop.f32.mrb[0].mxu0
    %481 = vmatprep.mubr.bf16.mxu0 0
    %482 = vmatmul.mubr.bf16.gmra.mrb[0].mxu0 %v215
    %v483 = vpop.f32.mrb[0].mxu0
    %v484 = vadd.f32 0.0, %v483
    %v485 = vpop.f32.mrb[0].mxu0
    %v486 = vpop.f32.mrb[0].mxu0
    %v487 = vadd.f32 0.0, %v486
    %v488 = vpop.f32.mrb[0].mxu0
    %489 = vmatprep.mubr.bf16.mxu0 0
    %490 = vmatmul.mubr.bf16.gmra.mrb[0].mxu0 %v218
    %v491 = vpop.f32.mrb[0].mxu0
    %v492 = vadd.f32 0.0, %v491
    %v493 = vpop.f32.mrb[0].mxu0
    %v494 = vpop.f32.mrb[0].mxu0
    %v495 = vadd.f32 0.0, %v494
    %v496 = vpop.f32.mrb[0].mxu0
    %497 = vmatprep.mubr.bf16.mxu0 0
    %498 = vmatmul.mubr.bf16.gmra.mrb[0].mxu0 %v221
    %v499 = vpop.f32.mrb[0].mxu0
    %v500 = vadd.f32 0.0, %v499
    %v501 = vpop.f32.mrb[0].mxu0
    %v502 = vpop.f32.mrb[0].mxu0
    %v503 = vadd.f32 0.0, %v502
    %v504 = vpop.f32.mrb[0].mxu0
    %505 = vmatprep.mubr.bf16.mxu0 0
    %506 = vmatmul.mubr.bf16.gmra.mrb[0].mxu0 %v224
    %v507 = vpop.f32.mrb[0].mxu0
    %v508 = vadd.f32 0.0, %v507
    %v509 = vpop.f32.mrb[0].mxu0
    %v510 = vpop.f32.mrb[0].mxu0
    %v511 = vadd.f32 0.0, %v510
    %v512 = vpop.f32.mrb[0].mxu0
    %513 = vmatprep.mubr.bf16.mxu0 0
    %514 = vmatmul.mubr.bf16.gmra.mrb[0].mxu0 %v227
    %v515 = vpop.f32.mrb[0].mxu0
    %v516 = vadd.f32 0.0, %v515
    %v517 = vpop.f32.mrb[0].mxu0
    %v518 = vpop.f32.mrb[0].mxu0
    %v519 = vadd.f32 0.0, %v518
    %v520 = vpop.f32.mrb[0].mxu0
    %521 = vdwg.mxu0
    %v522 = vmax.f32 %v268, 0.0
    %v523 = vmax.f32 %v271, 0.0
    %v524 = vmax.f32 %v276, 0.0
    %v525 = vmax.f32 %v279, 0.0
    %v526 = vmax.f32 %v284, 0.0
    %v527 = vmax.f32 %v287, 0.0
    %v528 = vmax.f32 %v292, 0.0
    %v529 = vmax.f32 %v295, 0.0
    %v530 = vmax.f32 %v300, 0.0
    %v531 = vmax.f32 %v303, 0.0
    %v532 = vmax.f32 %v308, 0.0
    %v533 = vmax.f32 %v311, 0.0
    %v534 = vmax.f32 %v316, 0.0
    %v535 = vmax.f32 %v319, 0.0
    %v536 = vmax.f32 %v324, 0.0
    %v537 = vmax.f32 %v327, 0.0
    %v538 = vmax.f32 %v332, 0.0
    %v539 = vmax.f32 %v335, 0.0
    %v540 = vmax.f32 %v340, 0.0
    %v541 = vmax.f32 %v343, 0.0
    %v542 = vmax.f32 %v348, 0.0
    %v543 = vmax.f32 %v351, 0.0
    %v544 = vmax.f32 %v356, 0.0
    %v545 = vmax.f32 %v359, 0.0
    %v546 = vmax.f32 %v364, 0.0
    %v547 = vmax.f32 %v367, 0.0
    %v548 = vmax.f32 %v372, 0.0
    %v549 = vmax.f32 %v375, 0.0
    %v550 = vmax.f32 %v380, 0.0
    %v551 = vmax.f32 %v383, 0.0
    %v552 = vmax.f32 %v388, 0.0
    %v553 = vmax.f32 %v391, 0.0
    %v554 = vmax.f32 %v396, 0.0
    %v555 = vmax.f32 %v399, 0.0
    %v556 = vmax.f32 %v404, 0.0
    %v557 = vmax.f32 %v407, 0.0
    %v558 = vmax.f32 %v412, 0.0
    %v559 = vmax.f32 %v415, 0.0
    %v560 = vmax.f32 %v420, 0.0
    %v561 = vmax.f32 %v423, 0.0
    %v562 = vmax.f32 %v428, 0.0
    %v563 = vmax.f32 %v431, 0.0
    %v564 = vmax.f32 %v436, 0.0
    %v565 = vmax.f32 %v439, 0.0
    %v566 = vmax.f32 %v444, 0.0
    %v567 = vmax.f32 %v447, 0.0
    %v568 = vmax.f32 %v452, 0.0
    %v569 = vmax.f32 %v455, 0.0
    %v570 = vmax.f32 %v460, 0.0
    %v571 = vmax.f32 %v463, 0.0
    %v572 = vmax.f32 %v468, 0.0
    %v573 = vmax.f32 %v471, 0.0
    %v574 = vmax.f32 %v476, 0.0
    %v575 = vmax.f32 %v479, 0.0
    %v576 = vmax.f32 %v484, 0.0
    %v577 = vmax.f32 %v487, 0.0
    %v578 = vmax.f32 %v492, 0.0
    %v579 = vmax.f32 %v495, 0.0
    %v580 = vmax.f32 %v500, 0.0
    %v581 = vmax.f32 %v503, 0.0
    %v582 = vmax.f32 %v508, 0.0
    %v583 = vmax.f32 %v511, 0.0
    %v584 = vmax.f32 %v516, 0.0
    %v585 = vmax.f32 %v519, 0.0
    %v586 = vld [vmem:[%s1] sm:$0xff]
    %v588 = vcombine.high %v586, %v586
    %v590 = vunpack.c.l.s4 1983009808
    %v591 = vunpack.c.0.s8 %v590
    %v592 = vlaneseq
    %v593 = vshrl.u32 %v592, 7
    %v594 = vsub.s32 %v591, %v593
    %v595 = vrot.slane %v586, %v594
    %v597 = vunpack.c.l.s4 1983009808
    %v598 = vunpack.c.0.s8 %v597
    %v599 = vlaneseq
    %v600 = vshrl.u32 %v599, 7
    %v601 = vsub.s32 %v598, %v600
    %v602 = vrot.slane %v588, %v601
    %v603 = vcombine.high %v595, %v595
    %v604 = vcombine.high %v602, %v602
    %609 = vmatprep.subr.mxu0 0.0
    %610 = vmatpush1.msra.mxu0 %v522
    %611 = vmatprep.subr.mxu0 0.0
    %612 = vmatpush1.msra.mxu0 %v523
    %613 = vmatprep.subr.mxu0 0.0
    %614 = vmatpush1.msra.mxu0 %v524
    %615 = vmatprep.subr.mxu0 0.0
    %616 = vmatpush1.msra.mxu0 %v525
    %617 = vmatprep.subr.mxu0 0.0
    %618 = vmatpush1.msra.mxu0 %v526
    %619 = vmatprep.subr.mxu0 0.0
    %620 = vmatpush1.msra.mxu0 %v527
    %621 = vmatprep.subr.mxu0 0.0
    %622 = vmatpush1.msra.mxu0 %v528
    %623 = vmatprep.subr.mxu0 0.0
    %624 = vmatpush1.msra.mxu0 %v529
    %625 = vmatprep.subr.mxu0 0.0
    %626 = vmatpush1.msra.mxu0 %v530
    %627 = vmatprep.subr.mxu0 0.0
    %628 = vmatpush1.msra.mxu0 %v531
    %629 = vmatprep.subr.mxu0 0.0
    %630 = vmatpush1.msra.mxu0 %v532
    %631 = vmatprep.subr.mxu0 0.0
    %632 = vmatpush1.msra.mxu0 %v533
    %633 = vmatprep.subr.mxu0 0.0
    %634 = vmatpush1.msra.mxu0 %v534
    %635 = vmatprep.subr.mxu0 0.0
    %636 = vmatpush1.msra.mxu0 %v535
    %637 = vmatprep.subr.mxu0 0.0
    %638 = vmatpush1.msra.mxu0 %v536
    %639 = vmatprep.subr.mxu0 0.0
    %640 = vmatpush1.msra.mxu0 %v537
    %641 = vmatprep.subr.mxu0 0.0
    %642 = vmatpush1.msra.mxu0 %v538
    %643 = vmatprep.subr.mxu0 0.0
    %644 = vmatpush1.msra.mxu0 %v539
    %645 = vmatprep.subr.mxu0 0.0
    %646 = vmatpush1.msra.mxu0 %v540
    %647 = vmatprep.subr.mxu0 0.0
    %648 = vmatpush1.msra.mxu0 %v541
    %649 = vmatprep.subr.mxu0 0.0
    %650 = vmatpush1.msra.mxu0 %v542
    %651 = vmatprep.subr.mxu0 0.0
    %652 = vmatpush1.msra.mxu0 %v543
    %653 = vmatprep.subr.mxu0 0.0
    %654 = vmatpush1.msra.mxu0 %v544
    %655 = vmatprep.subr.mxu0 0.0
    %656 = vmatpush1.msra.mxu0 %v545
    %657 = vmatprep.subr.mxu0 0.0
    %658 = vmatpush1.msra.mxu0 %v546
    %659 = vmatprep.subr.mxu0 0.0
    %660 = vmatpush1.msra.mxu0 %v547
    %661 = vmatprep.subr.mxu0 0.0
    %662 = vmatpush1.msra.mxu0 %v548
    %663 = vmatprep.subr.mxu0 0.0
    %664 = vmatpush1.msra.mxu0 %v549
    %665 = vmatprep.subr.mxu0 0.0
    %666 = vmatpush1.msra.mxu0 %v550
    %667 = vmatprep.subr.mxu0 0.0
    %668 = vmatpush1.msra.mxu0 %v551
    %669 = vmatprep.subr.mxu0 0.0
    %670 = vmatpush1.msra.mxu0 %v552
    %671 = vmatprep.subr.mxu0 0.0
    %672 = vmatpush1.msra.mxu0 %v553
    %673 = vmatprep.mubr.f32.mxu0 %v603
    %674 = vmatmul.mubr.f32.gmra.mrb[0].mxu0 %v595
    %v675 = vpop.f32.mrb[0].mxu0
    %v676 = vadd.f32 0.0, %v675
    %v677 = vpop.f32.mrb[0].mxu0
    %678 = vdwg.mxu0
    %679 = vmatprep.subr.mxu0 0.0
    %680 = vmatpush1.msra.mxu0 %v554
    %681 = vmatprep.subr.mxu0 0.0
    %682 = vmatpush1.msra.mxu0 %v555
    %683 = vmatprep.subr.mxu0 0.0
    %684 = vmatpush1.msra.mxu0 %v556
    %685 = vmatprep.subr.mxu0 0.0
    %686 = vmatpush1.msra.mxu0 %v557
    %687 = vmatprep.subr.mxu0 0.0
    %688 = vmatpush1.msra.mxu0 %v558
    %689 = vmatprep.subr.mxu0 0.0
    %690 = vmatpush1.msra.mxu0 %v559
    %691 = vmatprep.subr.mxu0 0.0
    %692 = vmatpush1.msra.mxu0 %v560
    %693 = vmatprep.subr.mxu0 0.0
    %694 = vmatpush1.msra.mxu0 %v561
    %695 = vmatprep.subr.mxu0 0.0
    %696 = vmatpush1.msra.mxu0 %v562
    %697 = vmatprep.subr.mxu0 0.0
    %698 = vmatpush1.msra.mxu0 %v563
    %699 = vmatprep.subr.mxu0 0.0
    %700 = vmatpush1.msra.mxu0 %v564
    %701 = vmatprep.subr.mxu0 0.0
    %702 = vmatpush1.msra.mxu0 %v565
    %703 = vmatprep.subr.mxu0 0.0
    %704 = vmatpush1.msra.mxu0 %v566
    %705 = vmatprep.subr.mxu0 0.0
    %706 = vmatpush1.msra.mxu0 %v567
    %707 = vmatprep.subr.mxu0 0.0
    %708 = vmatpush1.msra.mxu0 %v568
    %709 = vmatprep.subr.mxu0 0.0
    %710 = vmatpush1.msra.mxu0 %v569
    %711 = vmatprep.subr.mxu0 0.0
    %712 = vmatpush1.msra.mxu0 %v570
    %713 = vmatprep.subr.mxu0 0.0
    %714 = vmatpush1.msra.mxu0 %v571
    %715 = vmatprep.subr.mxu0 0.0
    %716 = vmatpush1.msra.mxu0 %v572
    %717 = vmatprep.subr.mxu0 0.0
    %718 = vmatpush1.msra.mxu0 %v573
    %719 = vmatprep.subr.mxu0 0.0
    %720 = vmatpush1.msra.mxu0 %v574
    %721 = vmatprep.subr.mxu0 0.0
    %722 = vmatpush1.msra.mxu0 %v575
    %723 = vmatprep.subr.mxu0 0.0
    %724 = vmatpush1.msra.mxu0 %v576
    %725 = vmatprep.subr.mxu0 0.0
    %726 = vmatpush1.msra.mxu0 %v577
    %727 = vmatprep.subr.mxu0 0.0
    %728 = vmatpush1.msra.mxu0 %v578
    %729 = vmatprep.subr.mxu0 0.0
    %730 = vmatpush1.msra.mxu0 %v579
    %731 = vmatprep.subr.mxu0 0.0
    %732 = vmatpush1.msra.mxu0 %v580
    %733 = vmatprep.subr.mxu0 0.0
    %734 = vmatpush1.msra.mxu0 %v581
    %735 = vmatprep.subr.mxu0 0.0
    %736 = vmatpush1.msra.mxu0 %v582
    %737 = vmatprep.subr.mxu0 0.0
    %738 = vmatpush1.msra.mxu0 %v583
    %739 = vmatprep.subr.mxu0 0.0
    %740 = vmatpush1.msra.mxu0 %v584
    %741 = vmatprep.subr.mxu0 0.0
    %742 = vmatpush1.msra.mxu0 %v585
    %743 = vmatprep.mubr.f32.mxu0 %v604
    %744 = vmatmul.mubr.f32.gmra.mrb[0].mxu0 %v602
    %v745 = vpop.f32.mrb[0].mxu0
    %v746 = vadd.f32 %v676, %v745
    %v747 = vpop.f32.mrb[0].mxu0
    %748 = vdwg.mxu0
    %v749 = vpack.c.bf16 %v746, %v746
    %v750 = vld [vmem:[%s3] sm:$0xff]
    %v751 = vpack.c.bf16 %v750, %v750
    %v752 = vld [vmem:[%s4] sm:$0x1]
    %v754 = vlaneseq
    %v755 = vshrl.u32 %v754, 7
    %v756 = vsub.s32 0, %v755
    %v757 = vrot.slane %v752, %v756
    %vm759 = vcmask 64512
    %v761 = vsel %vm759, %v749, 0
    %vm763 = vcmask 1043456
    %v765 = vsel %vm763, %v751, 0
    %767 = vmatprep.subr.bf16.mxu0 0
    %768 = vmatpush1.bf16.msra.mxu0 %v765
    %769 = vmatprep.subr.bf16.mxu0 0
    %770 = vmatpush1.bf16.msra.mxu0 0
    %771 = vmatprep.subr.bf16.mxu0 0
    %772 = vmatpush1.bf16.msra.mxu0 0
    %773 = vmatprep.subr.bf16.mxu0 0
    %774 = vmatpush1.bf16.msra.mxu0 0
    %775 = vmatprep.subr.bf16.mxu0 0
    %776 = vmatpush1.bf16.msra.mxu0 0
    %777 = vmatprep.subr.bf16.mxu0 0
    %778 = vmatpush1.bf16.msra.mxu0 0
    %779 = vmatprep.subr.bf16.mxu0 0
    %780 = vmatpush1.bf16.msra.mxu0 0
    %781 = vmatprep.subr.bf16.mxu0 0
    %782 = vmatpush1.bf16.msra.mxu0 0
    %783 = vmatprep.subr.bf16.mxu0 0
    %784 = vmatpush1.bf16.msra.mxu0 0
    %785 = vmatprep.subr.bf16.mxu0 0
    %786 = vmatpush1.bf16.msra.mxu0 0
    %787 = vmatprep.subr.bf16.mxu0 0
    %788 = vmatpush1.bf16.msra.mxu0 0
    %789 = vmatprep.subr.bf16.mxu0 0
    %790 = vmatpush1.bf16.msra.mxu0 0
    %791 = vmatprep.subr.bf16.mxu0 0
    %792 = vmatpush1.bf16.msra.mxu0 0
    %793 = vmatprep.subr.bf16.mxu0 0
    %794 = vmatpush1.bf16.msra.mxu0 0
    %795 = vmatprep.subr.bf16.mxu0 0
    %796 = vmatpush1.bf16.msra.mxu0 0
    %797 = vmatprep.subr.bf16.mxu0 0
    %798 = vmatpush1.bf16.msra.mxu0 0
    %799 = vmatprep.mubr.bf16.mxu0 0
    %800 = vmatmul.mubr.bf16.gmra.mrb[0].mxu0 %v761
    %v801 = vpop.f32.mrb[0].mxu0
    %v802 = vadd.f32 %v757, %v801
    %v803 = vpop.f32.mrb[0].mxu0
    %v804 = vpop.f32.mrb[0].mxu0
    %v805 = vpop.f32.mrb[0].mxu0
    %806 = vdwg.mxu0
    %v807 = vpack.c.bf16 %v802, %v802
    %v808 = vld [vmem:[%s5] sm:$0xff]
    %v809 = vld [vmem:[%s5 + $0x8] sm:$0xff]
    %v810 = vld [vmem:[%s5 + $0x10] sm:$0xff]
    %v811 = vld [vmem:[%s5 + $0x18] sm:$0xff]
    %v812 = vld [vmem:[%s5 + $0x20] sm:$0xff]
    %v813 = vld [vmem:[%s5 + $0x28] sm:$0xff]
    %v814 = vld [vmem:[%s5 + $0x30] sm:$0xff]
    %v815 = vld [vmem:[%s5 + $0x38] sm:$0xff]
    %v816 = vpack.c.bf16 %v809, %v808
    %v817 = vpack.c.bf16 %v811, %v810
    %v818 = vpack.c.bf16 %v813, %v812
    %v819 = vpack.c.bf16 %v815, %v814
    %v820 = vld [vmem:[%s6] sm:$0x1]
    %v822 = vlaneseq
    %v823 = vshrl.u32 %v822, 7
    %v824 = vsub.s32 0, %v823
    %v825 = vrot.slane %v820, %v824
    %vm827 = vcmask 523264
    %v829 = vsel %vm827, %v807, 0
    %831 = vmatprep.subr.bf16.mxu0 0
    %832 = vmatpush1.bf16.msra.mxu0 %v816
    %833 = vmatprep.subr.bf16.mxu0 0
    %834 = vmatpush1.bf16.msra.mxu0 %v817
    %835 = vmatprep.subr.bf16.mxu0 0
    %836 = vmatpush1.bf16.msra.mxu0 %v818
    %837 = vmatprep.subr.bf16.mxu0 0
    %838 = vmatpush1.bf16.msra.mxu0 %v819
    %839 = vmatprep.subr.bf16.mxu0 0
    %840 = vmatpush1.bf16.msra.mxu0 0
    %841 = vmatprep.subr.bf16.mxu0 0
    %842 = vmatpush1.bf16.msra.mxu0 0
    %843 = vmatprep.subr.bf16.mxu0 0
    %844 = vmatpush1.bf16.msra.mxu0 0
    %845 = vmatprep.subr.bf16.mxu0 0
    %846 = vmatpush1.bf16.msra.mxu0 0
    %847 = vmatprep.subr.bf16.mxu0 0
    %848 = vmatpush1.bf16.msra.mxu0 0
    %849 = vmatprep.subr.bf16.mxu0 0
    %850 = vmatpush1.bf16.msra.mxu0 0
    %851 = vmatprep.subr.bf16.mxu0 0
    %852 = vmatpush1.bf16.msra.mxu0 0
    %853 = vmatprep.subr.bf16.mxu0 0
    %854 = vmatpush1.bf16.msra.mxu0 0
    %855 = vmatprep.subr.bf16.mxu0 0
    %856 = vmatpush1.bf16.msra.mxu0 0
    %857 = vmatprep.subr.bf16.mxu0 0
    %858 = vmatpush1.bf16.msra.mxu0 0
    %859 = vmatprep.subr.bf16.mxu0 0
    %860 = vmatpush1.bf16.msra.mxu0 0
    %861 = vmatprep.subr.bf16.mxu0 0
    %862 = vmatpush1.bf16.msra.mxu0 0
    %863 = vmatprep.mubr.bf16.mxu0 0
    %864 = vmatmul.mubr.bf16.gmra.mrb[0].mxu0 %v829
    %v865 = vpop.f32.mrb[0].mxu0
    %v866 = vadd.f32 %v825, %v865
    %v867 = vpop.f32.mrb[0].mxu0
    %v868 = vpop.f32.mrb[0].mxu0
    %v869 = vpop.f32.mrb[0].mxu0
    %870 = vdwg.mxu0
    %871 = vst [vmem:[#allocation2] sm:$0x3] %v866
    // Predicated region
    $region30: #{adversarial_model_forward.1} parent=1 // pred_check
      _
    $region31: #{adversarial_model_forward.1} parent=1 // pred_check_branch
      %873 = sbr.rel (0) target = $region33
    $region32: #{adversarial_model_forward.1} parent=1 // pred_region
      %s875 = ssub.s32 32, 32
      %876 = vsyncadd [#allocation3], %s875
      %s878 = sshll.u32 [#allocation2], 4
      %s879 = int_to_ptr.vmem [resolvable:$true] %s878
      %881 = dma.vmem_to_hbm [thread:$0]  %s879, 32, %s7, [#allocation3]
    $region33: #{adversarial_model_forward.1} parent=1 // pred_fallthru
      _
    // Predicated region
    $region34: #{adversarial_model_forward.1} parent=1 // pred_check
      _
    $region35: #{adversarial_model_forward.1} parent=1 // pred_check_branch
      %883 = sbr.rel (0) target = $region37
    $region36: #{adversarial_model_forward.1} parent=1 // pred_region
      %884 = dma.done [#allocation3], 32
    $region37: #{adversarial_model_forward.1} parent=1 // pred_fallthru
      _
    %885 = vsyncpa [#allocation3], 1

</llo_original>
